<compile_context>
chip_gen: v7x
topology: tpu7x:2x2x1
jax: 0.10.0
libtpu: 0.0.40
codegen_flags: <defaults>
</compile_context>

<pallas_src>
import functools
import math

import jax
import jax.numpy as jnp
from jax.experimental import pallas as pl
from jax.experimental.pallas import tpu as pltpu

_LANE = 128
_SUB = 8
_VMEM_BUDGET_BYTES = 24 * 1024 * 1024   # double-buffered block budget


def _round_up(x, m):
    return ((x + m - 1) // m) * m


def _va_kernel(x_ref, c_ref, w1x_ref, w1c_ref, w2_ref, b_ref, out_ref, *,
               chunk_rows):
    # Per grid step (G voxels packed per row, TR rows per step):
    #   x_ref   : (TR, G*N*C)  VMEM  row r, lane v*N*C+n*C+c == paca[r*G+v, n, c]
    #   c_ref   : (TR, 3*G)    VMEM  row r, lane v*3+d       == center[r*G+v, 0, d]
    #   w1x_ref : (G*N*C, G*N) VMEM  block-diag fc1 weight (paca channels)
    #   w1c_ref : (3*G,  G*N)  VMEM  block fc1 weight (voxel center)
    #   w2_ref  : (G*N,  G)    VMEM  block-diag fc2 weight
    #   b_ref   : (2,)         SMEM  [fc1 bias, fc2 bias]
    #   out_ref : (TR, G)      VMEM  per-voxel attention weight
    tr = out_ref.shape[0]
    b1 = b_ref[0]
    b2 = b_ref[1]

    def do_rows(r0, rc):
        x = x_ref[pl.ds(r0, rc), :]                       # (rc, G*N*C)
        ctr = c_ref[pl.ds(r0, rc), :]                     # (rc, 3*G)
        # fc1 = paca part + center part (both on the otherwise-idle MXU).
        ft = jnp.dot(x, w1x_ref[...], preferred_element_type=jnp.float32)
        ft = ft + jnp.dot(ctr, w1c_ref[...],
                          preferred_element_type=jnp.float32)
        s = jnp.maximum(ft + b1, 0.0)                     # ReLU(fc1), (rc, G*N)
        # fc2 (sum over the N points of each voxel) + ReLU + sigmoid.
        a = jnp.dot(s, w2_ref[...],
                    preferred_element_type=jnp.float32) + b2   # (rc, G)
        out_ref[pl.ds(r0, rc), :] = jax.nn.sigmoid(jnp.maximum(a, 0.0))

    # Chunk the row (sublane) dim so the vreg working set stays small and is
    # decoupled from the (large) DMA tile size.
    cr = min(chunk_rows, tr)
    n_full = tr // cr
    if n_full == 1:
        do_rows(0, cr)
    else:
        def body(i, carry):
            do_rows(pl.multiple_of(i * cr, cr), cr)
            return carry
        jax.lax.fori_loop(0, n_full, body, 0)
    rem = tr - n_full * cr
    if rem:
        do_rows(n_full * cr, rem)


@functools.partial(jax.jit, static_argnames=("tk",))
def va_layer(voxel_center, paca_feat, w1, b1, w2, b2, *, tk=16384):
    """Pallas implementation of VALayer.forward.

    voxel_center: (K, 1, 3) f32
    paca_feat:    (K, N, C) f32
    w1: (1, C+3) fc1 weight (PyTorch Linear layout, out_features=1)
    b1: (1,)     fc1 bias
    w2: (1, N)   fc2 weight
    b2: (1,)     fc2 bias
    tk: target voxels per grid step.
    returns:      (K, 1, 1) f32
    """
    K, N, C = paca_feat.shape
    F = N * C

    # ---- voxel grouping: pack G voxels per row (free row-major reshapes,
    # no transpose / pad of the big slab).  G is the largest power of two
    # dividing K such that the block-diagonal weights stay tiny; when K
    # allows it, G makes the row width a multiple of 128 lanes.
    g_max = _LANE // math.gcd(F, _LANE)                   # power of two
    while g_max > 1 and 4 * (g_max * F) * (g_max * N) > (1 << 20):
        g_max //= 2
    G = math.gcd(K, g_max)
    rows = K // G
    W = G * F

    x2d = jnp.reshape(paca_feat, (rows, W))               # free reshape
    c2d = jnp.reshape(voxel_center, (rows, 3 * G))        # free reshape

    # ---- tiny block-structured weights (built once; negligible) -----------
    w1f = jnp.reshape(w1[:, :C], (C,)).astype(jnp.float32)
    w1c = jnp.reshape(w1[:, C:C + 3], (3,)).astype(jnp.float32)
    w2v = jnp.reshape(w2, (N,)).astype(jnp.float32)
    eye_g = jnp.eye(G, dtype=jnp.float32)
    eye_n = jnp.eye(N, dtype=jnp.float32)
    # W1x[v*N*C + n*C + c, v*N + n] = w1f[c]
    w1x_blk = jnp.einsum("vw,nm,c->vncwm", eye_g, eye_n, w1f).reshape(W, G * N)
    # W1c[v*3 + d, v*N + n] = w1c[d]
    w1c_blk = jnp.einsum("vw,d,m->vdwm", eye_g, w1c,
                         jnp.ones((N,), jnp.float32)).reshape(3 * G, G * N)
    # W2[v*N + n, v] = w2[n]
    w2_blk = jnp.einsum("vw,n->vnw", eye_g, w2v).reshape(G * N, G)
    b = jnp.stack([jnp.reshape(b1, ()), jnp.reshape(b2, ())]).astype(jnp.float32)

    # ---- rows per grid step: large tiles (amortise ~0.35us/step), capped by
    # a ~24 MiB double-buffer budget (safe under v7x's 64 MiB VMEM and the
    # 32 MiB scoped default) and split >=4 ways for big inputs so both v7x
    # TensorCores get work on the "parallel" axis.
    per_row = 4 * (_round_up(W, _LANE) + _round_up(3 * G, _LANE)
                   + _round_up(G, _LANE))
    tr_vmem = max(_SUB, _VMEM_BUDGET_BYTES // (2 * per_row))
    min_rows = max(_SUB, _round_up(max(1, 4096 // G), _SUB))
    tr_mc = max(min_rows, -(-rows // 4))
    tr = min(max(_SUB, -(-tk // G)), tr_vmem, tr_mc)
    if tr >= rows:
        tr = rows                                          # single block
    else:
        tr = max(_SUB, (tr // _SUB) * _SUB)                # sublane-aligned
    grid = (pl.cdiv(rows, tr),)                            # edge block masked

    # In-kernel chunk size: keep the per-chunk x slice at ~16 vregs.
    chunk_rows = max(_SUB,
                     min(512, (16384 // _round_up(W, _LANE)) // _SUB * _SUB))

    kernel = functools.partial(_va_kernel, chunk_rows=chunk_rows)
    out2d = pl.pallas_call(
        kernel,
        out_shape=jax.ShapeDtypeStruct((rows, G), jnp.float32),
        grid_spec=pltpu.PrefetchScalarGridSpec(
            num_scalar_prefetch=0,
            grid=grid,
            in_specs=[
                pl.BlockSpec((tr, W), lambda i: (i, 0)),            # paca rows
                pl.BlockSpec((tr, 3 * G), lambda i: (i, 0)),        # centers
                pl.BlockSpec((W, G * N), lambda i: (0, 0)),         # fc1 paca W
                pl.BlockSpec((3 * G, G * N), lambda i: (0, 0)),     # fc1 ctr W
                pl.BlockSpec((G * N, G), lambda i: (0, 0)),         # fc2 W
                pl.BlockSpec(memory_space=pltpu.MemorySpace.SMEM),  # biases
            ],
            out_specs=pl.BlockSpec((tr, G), lambda i: (i, 0)),
        ),
        compiler_params=pltpu.CompilerParams(
            dimension_semantics=("parallel",)),
    )(x2d, c2d, w1x_blk, w1c_blk, w2_blk, b)

    return jnp.reshape(out2d, (K, 1, 1))                   # free reshape


def va_layer_ref(voxel_center, paca_feat, w1, b1, w2, b2):
    """Pure-JAX reference mirroring the PyTorch forward exactly."""
    K, N, C = paca_feat.shape
    center_rep = jnp.broadcast_to(voxel_center, (K, N, 3))
    cat = jnp.concatenate([paca_feat, center_rep], axis=-1)          # (K, N, C+3)
    f2 = jnp.maximum(jnp.einsum("knd,od->kno", cat, w1) + b1, 0.0)   # (K, N, 1)
    f2 = jnp.transpose(f2, (0, 2, 1))                                # (K, 1, N)
    f3 = jnp.maximum(jnp.einsum("kon,pn->kop", f2, w2) + b2, 0.0)    # (K, 1, 1)
    return jax.nn.sigmoid(f3)


if __name__ == "__main__":
    # Small, TANet-consistent shapes: c_num=4 channels, p_num=8 points/voxel.
    c_num, p_num = 4, 8

    key = jax.random.PRNGKey(0)
    k_w1, k_b1, k_w2, k_b2 = jax.random.split(key, 4)

    # Deterministic params mimicking torch.nn.Linear init (+-1/sqrt(fan_in)).
    lim1 = 1.0 / jnp.sqrt(float(c_num + 3))
    w1 = jax.random.uniform(k_w1, (1, c_num + 3), jnp.float32, -lim1, lim1)
    b1 = jax.random.uniform(k_b1, (1,), jnp.float32, -lim1, lim1)
    lim2 = 1.0 / jnp.sqrt(float(p_num))
    w2 = jax.random.uniform(k_w2, (1, p_num), jnp.float32, -lim2, lim2)
    b2 = jax.random.uniform(k_b2, (1,), jnp.float32, -lim2, lim2)

    def run_case(K, seed, **kw):
        kp, kv = jax.random.split(jax.random.PRNGKey(seed), 2)
        paca = jax.random.normal(kp, (K, p_num, c_num), dtype=jnp.float32)
        vc = jax.random.normal(kv, (K, 1, 3), dtype=jnp.float32)
        out = jax.block_until_ready(va_layer(vc, paca, w1, b1, w2, b2, **kw))
        ref = va_layer_ref(vc, paca, w1, b1, w2, b2)
        assert out.shape == (K, 1, 1), out.shape
        # Tolerance leaves headroom for MXU f32 rounding / FP reassociation.
        assert jnp.allclose(out, ref, atol=1e-4, rtol=1e-4), (
            jnp.max(jnp.abs(out - ref)))

    run_case(16, seed=1)            # tiny K, K % 4 == 0 (single block, G=4)
    run_case(300, seed=2)           # ragged row count (75-row block, G=4)
    run_case(301, seed=3, tk=128)   # K not divisible by 4 -> G=1 fallback,
                                    # multi-step grid with masked edge block

    print("KERNEL_OK")
</pallas_src>

<mosaic_0001>
module attributes {stable_mosaic.version = 11 : i64} {
  func.func @_va_kernel(%arg0: i32, %arg1: memref<4x128xf32, #tpu.memory_space<vmem>>, %arg2: memref<4x12xf32, #tpu.memory_space<vmem>>, %arg3: memref<128x32xf32, #tpu.memory_space<vmem>>, %arg4: memref<12x32xf32, #tpu.memory_space<vmem>>, %arg5: memref<32x4xf32, #tpu.memory_space<vmem>>, %arg6: memref<2xf32, #tpu.memory_space<smem>>, %arg7: memref<4x4xf32, #tpu.memory_space<vmem>>) attributes {dimension_semantics = [#tpu.dimension_semantics<parallel>], iteration_bounds = array<i64: 1>, scalar_prefetch = 0 : i64, scratch_operands = 0 : i64, tpu.core_type = #tpu.core_type<tc>, window_params = [{transform_indices = @transform_0, window_bounds = array<i64: 4, 128>}, {transform_indices = @transform_1, window_bounds = array<i64: 4, 12>}, {pipeline_mode = #tpu.pipeline_mode<synchronous>, transform_indices = @transform_2, window_bounds = array<i64: 128, 32>}, {pipeline_mode = #tpu.pipeline_mode<synchronous>, transform_indices = @transform_3, window_bounds = array<i64: 12, 32>}, {pipeline_mode = #tpu.pipeline_mode<synchronous>, transform_indices = @transform_4, window_bounds = array<i64: 32, 4>}, {transform_indices = @transform_5, window_bounds = array<i64: 2>}, {transform_indices = @transform_6, window_bounds = array<i64: 4, 4>}]} {
    %c0 = arith.constant 0 : index
    %0 = memref.load %arg6[%c0] : memref<2xf32, #tpu.memory_space<smem>>
    %c1 = arith.constant 1 : index
    %1 = memref.load %arg6[%c1] : memref<2xf32, #tpu.memory_space<smem>>
    %c0_0 = arith.constant 0 : index
    %c0_1 = arith.constant 0 : index
    %2 = vector.load %arg1[%c0_0, %c0_1] : memref<4x128xf32, #tpu.memory_space<vmem>>, vector<4x128xf32>
    %c0_2 = arith.constant 0 : index
    %c0_3 = arith.constant 0 : index
    %3 = vector.load %arg2[%c0_2, %c0_3] : memref<4x12xf32, #tpu.memory_space<vmem>>, vector<4x12xf32>
    %c0_4 = arith.constant 0 : index
    %c0_5 = arith.constant 0 : index
    %4 = vector.load %arg3[%c0_4, %c0_5] : memref<128x32xf32, #tpu.memory_space<vmem>>, vector<128x32xf32>
    %cst = arith.constant dense<0.000000e+00> : vector<4x32xf32>
    %5 = tpu.matmul %2, %4, %cst {dimension_numbers = #tpu.dot_dimension_numbers<[1], [0], [0], [1], [0, 0, 1, 1], [], []>} : vector<4x128xf32>, vector<128x32xf32>, vector<4x32xf32> -> vector<4x32xf32>
    %c0_6 = arith.constant 0 : index
    %c0_7 = arith.constant 0 : index
    %6 = vector.load %arg4[%c0_6, %c0_7] : memref<12x32xf32, #tpu.memory_space<vmem>>, vector<12x32xf32>
    %cst_8 = arith.constant dense<0.000000e+00> : vector<4x32xf32>
    %7 = tpu.matmul %3, %6, %cst_8 {dimension_numbers = #tpu.dot_dimension_numbers<[1], [0], [0], [1], [0, 0, 1, 1], [], []>} : vector<4x12xf32>, vector<12x32xf32>, vector<4x32xf32> -> vector<4x32xf32>
    %8 = arith.addf %5, %7 : vector<4x32xf32>
    %9 = vector.broadcast %0 : f32 to vector<4x32xf32>
    %10 = arith.addf %8, %9 : vector<4x32xf32>
    %cst_9 = arith.constant 0.000000e+00 : f32
    %11 = vector.broadcast %cst_9 : f32 to vector<4x32xf32>
    %12 = arith.maximumf %10, %11 : vector<4x32xf32>
    %c0_10 = arith.constant 0 : index
    %c0_11 = arith.constant 0 : index
    %13 = vector.load %arg5[%c0_10, %c0_11] : memref<32x4xf32, #tpu.memory_space<vmem>>, vector<32x4xf32>
    %cst_12 = arith.constant dense<0.000000e+00> : vector<4x4xf32>
    %14 = tpu.matmul %12, %13, %cst_12 {dimension_numbers = #tpu.dot_dimension_numbers<[1], [0], [0], [1], [0, 0, 1, 1], [], []>} : vector<4x32xf32>, vector<32x4xf32>, vector<4x4xf32> -> vector<4x4xf32>
    %15 = vector.broadcast %1 : f32 to vector<4x4xf32>
    %16 = arith.addf %14, %15 : vector<4x4xf32>
    %cst_13 = arith.constant 0.000000e+00 : f32
    %17 = vector.broadcast %cst_13 : f32 to vector<4x4xf32>
    %18 = arith.maximumf %16, %17 : vector<4x4xf32>
    %19 = arith.negf %18 : vector<4x4xf32>
    %20 = math.exp %19 : vector<4x4xf32>
    %cst_14 = arith.constant 1.000000e+00 : f32
    %21 = vector.broadcast %cst_14 : f32 to vector<4x4xf32>
    %22 = arith.addf %21, %20 : vector<4x4xf32>
    %23 = arith.divf %21, %22 : vector<4x4xf32>
    %c0_15 = arith.constant 0 : index
    %c0_16 = arith.constant 0 : index
    %24 = vector.load %arg7[%c0_15, %c0_16] : memref<4x4xf32, #tpu.memory_space<vmem>>, vector<4x4xf32>
    tpu.vector_store %arg7[%c0_15, %c0_16], %23 {strides = array<i32>} : memref<4x4xf32, #tpu.memory_space<vmem>>, vector<4x4xf32>,
    return
  }
  func.func @transform_0(%arg0: i32) -> (i32, i32) {
    %c0_i32 = arith.constant 0 : i32
    %c0_i32_0 = arith.constant 0 : i32
    return %arg0, %c0_i32 : i32, i32
  }
  func.func @transform_1(%arg0: i32) -> (i32, i32) {
    %c0_i32 = arith.constant 0 : i32
    %c0_i32_0 = arith.constant 0 : i32
    return %arg0, %c0_i32 : i32, i32
  }
  func.func @transform_2(%arg0: i32) -> (i32, i32) {
    %c0_i32 = arith.constant 0 : i32
    %c0_i32_0 = arith.constant 0 : i32
    %c0_i32_1 = arith.constant 0 : i32
    return %c0_i32, %c0_i32_0 : i32, i32
  }
  func.func @transform_3(%arg0: i32) -> (i32, i32) {
    %c0_i32 = arith.constant 0 : i32
    %c0_i32_0 = arith.constant 0 : i32
    %c0_i32_1 = arith.constant 0 : i32
    return %c0_i32, %c0_i32_0 : i32, i32
  }
  func.func @transform_4(%arg0: i32) -> (i32, i32) {
    %c0_i32 = arith.constant 0 : i32
    %c0_i32_0 = arith.constant 0 : i32
    %c0_i32_1 = arith.constant 0 : i32
    return %c0_i32, %c0_i32_0 : i32, i32
  }
  func.func @transform_5(%arg0: i32) -> i32 {
    %c0_i32 = arith.constant 0 : i32
    %c0_i32_0 = arith.constant 0 : i32
    return %c0_i32 : i32
  }
  func.func @transform_6(%arg0: i32) -> (i32, i32) {
    %c0_i32 = arith.constant 0 : i32
    %c0_i32_0 = arith.constant 0 : i32
    return %arg0, %c0_i32 : i32, i32
  }
}

</mosaic_0001>

<llo_original>
// kernel: va_layer.1
$region0: #{va_layer.1}
  #allocation0 [shape = 'u32[]', space=smem, size = 0x4, offset = 0x4, fixed_abs, tag = 'smem constant byte address 0x4 - core index']
  #allocation1 [shape = 'u32[144,128]{1,0:T(1,128)}', space=vmem, size = 0x12000, scoped, tag = 'internal scratch']
  %s0 = inlined_call_operand.vmem [shape: f32[4,128], index: 0, kind: input, shape index: {}]
  %s1 = inlined_call_operand.vmem [shape: f32[4,12], index: 1, kind: input, shape index: {}]
  %s2 = inlined_call_operand.vmem [shape: f32[128,32], index: 2, kind: input, shape index: {}]
  %s3 = inlined_call_operand.vmem [shape: f32[12,32], index: 3, kind: input, shape index: {}]
  %s4 = inlined_call_operand.vmem [shape: f32[32,4], index: 4, kind: input, shape index: {}]
  %s5 = inlined_call_operand.vmem [shape: f32[2], index: 5, kind: input, shape index: {}]
  %s6 = inlined_call_operand.vmem [shape: f32[4,4], index: 6, kind: output, shape index: {}]
  %s7 = sld [smem:[#allocation0]]
  $region38: #{va_layer.1} parent=0
    _
  %s9 = ssub.s32 1, %s7
  %s10 = scalar_select 0, %s9, %s7
  $region1: #{va_layer.1} parent=0
    #allocation2 [shape = 'u8[512]{0}', space=smem, size = 0x200, scoped, tag = 'input window, operand 5, single buffered']
    #allocation3 [shape = 's32[1]{0}', space=sflag, size = 0x4, scoped, tag = 'scoped memory for va_layer.1']
    %11 = vsyncpa [#allocation3], 0
    // Predicated region
    $region2: #{va_layer.1} parent=1 // pred_check
      _
    $region3: #{va_layer.1} parent=1 // pred_check_branch
      %13 = sbr.rel (0) target = $region5
    $region4: #{va_layer.1} parent=1 // pred_region
      _
    $region5: #{va_layer.1} parent=1 // pred_fallthru
      _
    // Predicated region
    $region6: #{va_layer.1} parent=1 // pred_check
      _
    $region7: #{va_layer.1} parent=1 // pred_check_branch
      %15 = sbr.rel (0) target = $region9
    $region8: #{va_layer.1} parent=1 // pred_region
      _
    $region9: #{va_layer.1} parent=1 // pred_fallthru
      _
    // Predicated region
    $region10: #{va_layer.1} parent=1 // pred_check
      _
    $region11: #{va_layer.1} parent=1 // pred_check_branch
      %17 = sbr.rel (0) target = $region13
    $region12: #{va_layer.1} parent=1 // pred_region
      _
    $region13: #{va_layer.1} parent=1 // pred_fallthru
      _
    // Predicated region
    $region14: #{va_layer.1} parent=1 // pred_check
      _
    $region15: #{va_layer.1} parent=1 // pred_check_branch
      %19 = sbr.rel (0) target = $region17
    $region16: #{va_layer.1} parent=1 // pred_region
      _
    $region17: #{va_layer.1} parent=1 // pred_fallthru
      _
    // Predicated region
    $region18: #{va_layer.1} parent=1 // pred_check
      _
    $region19: #{va_layer.1} parent=1 // pred_check_branch
      %21 = sbr.rel (0) target = $region21
    $region20: #{va_layer.1} parent=1 // pred_region
      _
    $region21: #{va_layer.1} parent=1 // pred_fallthru
      _
    // Predicated region
    $region22: #{va_layer.1} parent=1 // pred_check
      _
    $region23: #{va_layer.1} parent=1 // pred_check_branch
      %23 = sbr.rel (0) target = $region25
    $region24: #{va_layer.1} parent=1 // pred_region
      %s25 = ssub.s32 16, 16
      %26 = vsyncadd [#allocation3], %s25
      %s28 = sshll.u32 %s5, 4
      %s29 = int_to_ptr.vmem [resolvable:$true] %s28
      %31 = dma.vmem_to_smem %s29, 16, [#allocation2], [#allocation3]
    $region25: #{va_layer.1} parent=1 // pred_fallthru
      _
    // Predicated region
    $region26: #{va_layer.1} parent=1 // pred_check
      _
    $region27: #{va_layer.1} parent=1 // pred_check_branch
      %33 = sbr.rel (0) target = $region29
    $region28: #{va_layer.1} parent=1 // pred_region
      %34 = dma.done [#allocation3], 16
    $region29: #{va_layer.1} parent=1 // pred_fallthru
      _
    %35 = sfence
    %s36 = sld [smem:[#allocation2]]
    %s37 = sld [smem:[#allocation2 + $0x1]]
    %v38 = vld [vmem:[%s0] sm:$0xf]
    %v39 = vld [vmem:[%s1] sm:$0xf]
    %v40 = vld [vmem:[%s2] sm:$0xff]
    %v41 = vld [vmem:[%s2 + $0x8] sm:$0xff]
    %v42 = vld [vmem:[%s2 + $0x10] sm:$0xff]
    %v43 = vld [vmem:[%s2 + $0x18] sm:$0xff]
    %v44 = vld [vmem:[%s2 + $0x20] sm:$0xff]
    %v45 = vld [vmem:[%s2 + $0x28] sm:$0xff]
    %v46 = vld [vmem:[%s2 + $0x30] sm:$0xff]
    %v47 = vld [vmem:[%s2 + $0x38] sm:$0xff]
    %v48 = vld [vmem:[%s2 + $0x40] sm:$0xff]
    %v49 = vld [vmem:[%s2 + $0x48] sm:$0xff]
    %v50 = vld [vmem:[%s2 + $0x50] sm:$0xff]
    %v51 = vld [vmem:[%s2 + $0x58] sm:$0xff]
    %v52 = vld [vmem:[%s2 + $0x60] sm:$0xff]
    %v53 = vld [vmem:[%s2 + $0x68] sm:$0xff]
    %v54 = vld [vmem:[%s2 + $0x70] sm:$0xff]
    %v55 = vld [vmem:[%s2 + $0x78] sm:$0xff]
    %v56 = vld [vmem:[%s3] sm:$0xff]
    %v57 = vld [vmem:[%s3 + $0x8] sm:$0xf]
    %vm58 = vcmask 97280
    %v60 = vsel %vm58, %v39, 0
    %vm62 = vcmask 1043456
    %v64 = vsel %vm62, %v57, 0
    %66 = vmatprep.subr.mxu0 0.0
    %67 = vmatpush1.msra.mxu0 %v56
    %68 = vmatprep.subr.mxu0 0.0
    %69 = vmatpush1.msra.mxu0 %v64
    %70 = vmatprep.subr.mxu0 0.0
    %71 = vmatpush1.msra.mxu0 0.0
    %72 = vmatprep.subr.mxu0 0.0
    %73 = vmatpush1.msra.mxu0 0.0
    %74 = vmatprep.subr.mxu0 0.0
    %75 = vmatpush1.msra.mxu0 0.0
    %76 = vmatprep.subr.mxu0 0.0
    %77 = vmatpush1.msra.mxu0 0.0
    %78 = vmatprep.subr.mxu0 0.0
    %79 = vmatpush1.msra.mxu0 0.0
    %80 = vmatprep.subr.mxu0 0.0
    %81 = vmatpush1.msra.mxu0 0.0
    %82 = vmatprep.subr.mxu0 0.0
    %83 = vmatpush1.msra.mxu0 0.0
    %84 = vmatprep.subr.mxu0 0.0
    %85 = vmatpush1.msra.mxu0 0.0
    %86 = vmatprep.subr.mxu0 0.0
    %87 = vmatpush1.msra.mxu0 0.0
    %88 = vmatprep.subr.mxu0 0.0
    %89 = vmatpush1.msra.mxu0 0.0
    %90 = vmatprep.subr.mxu0 0.0
    %91 = vmatpush1.msra.mxu0 0.0
    %92 = vmatprep.subr.mxu0 0.0
    %93 = vmatpush1.msra.mxu0 0.0
    %94 = vmatprep.subr.mxu0 0.0
    %95 = vmatpush1.msra.mxu0 0.0
    %96 = vmatprep.subr.mxu0 0.0
    %97 = vmatpush1.msra.mxu0 0.0
    %98 = vmatprep.subr.mxu0 0.0
    %99 = vmatpush1.msra.mxu0 0.0
    %100 = vmatprep.subr.mxu0 0.0
    %101 = vmatpush1.msra.mxu0 0.0
    %102 = vmatprep.subr.mxu0 0.0
    %103 = vmatpush1.msra.mxu0 0.0
    %104 = vmatprep.subr.mxu0 0.0
    %105 = vmatpush1.msra.mxu0 0.0
    %106 = vmatprep.subr.mxu0 0.0
    %107 = vmatpush1.msra.mxu0 0.0
    %108 = vmatprep.subr.mxu0 0.0
    %109 = vmatpush1.msra.mxu0 0.0
    %110 = vmatprep.subr.mxu0 0.0
    %111 = vmatpush1.msra.mxu0 0.0
    %112 = vmatprep.subr.mxu0 0.0
    %113 = vmatpush1.msra.mxu0 0.0
    %114 = vmatprep.subr.mxu0 0.0
    %115 = vmatpush1.msra.mxu0 0.0
    %116 = vmatprep.subr.mxu0 0.0
    %117 = vmatpush1.msra.mxu0 0.0
    %118 = vmatprep.subr.mxu0 0.0
    %119 = vmatpush1.msra.mxu0 0.0
    %120 = vmatprep.subr.mxu0 0.0
    %121 = vmatpush1.msra.mxu0 0.0
    %122 = vmatprep.subr.mxu0 0.0
    %123 = vmatpush1.msra.mxu0 0.0
    %124 = vmatprep.subr.mxu0 0.0
    %125 = vmatpush1.msra.mxu0 0.0
    %126 = vmatprep.subr.mxu0 0.0
    %127 = vmatpush1.msra.mxu0 0.0
    %128 = vmatprep.subr.mxu0 0.0
    %129 = vmatpush1.msra.mxu0 0.0
    %130 = vmatprep.mubr.f32.mxu0 0.0
    %131 = vmatmul.mubr.f32.gmra.mrb[0].mxu0 %v60
    %v132 = vpop.f32.mrb[0].mxu0
    %v133 = vadd.f32 0.0, %v132
    %v134 = vpop.f32.mrb[0].mxu0
    %135 = vdwg.mxu0
    %136 = vmatprep.subr.mxu0 0.0
    %137 = vmatpush1.msra.mxu0 %v40
    %138 = vmatprep.subr.mxu0 0.0
    %139 = vmatpush1.msra.mxu0 %v41
    %140 = vmatprep.subr.mxu0 0.0
    %141 = vmatpush1.msra.mxu0 %v42
    %142 = vmatprep.subr.mxu0 0.0
    %143 = vmatpush1.msra.mxu0 %v43
    %144 = vmatprep.subr.mxu0 0.0
    %145 = vmatpush1.msra.mxu0 %v44
    %146 = vmatprep.subr.mxu0 0.0
    %147 = vmatpush1.msra.mxu0 %v45
    %148 = vmatprep.subr.mxu0 0.0
    %149 = vmatpush1.msra.mxu0 %v46
    %150 = vmatprep.subr.mxu0 0.0
    %151 = vmatpush1.msra.mxu0 %v47
    %152 = vmatprep.subr.mxu0 0.0
    %153 = vmatpush1.msra.mxu0 %v48
    %154 = vmatprep.subr.mxu0 0.0
    %155 = vmatpush1.msra.mxu0 %v49
    %156 = vmatprep.subr.mxu0 0.0
    %157 = vmatpush1.msra.mxu0 %v50
    %158 = vmatprep.subr.mxu0 0.0
    %159 = vmatpush1.msra.mxu0 %v51
    %160 = vmatprep.subr.mxu0 0.0
    %161 = vmatpush1.msra.mxu0 %v52
    %162 = vmatprep.subr.mxu0 0.0
    %163 = vmatpush1.msra.mxu0 %v53
    %164 = vmatprep.subr.mxu0 0.0
    %165 = vmatpush1.msra.mxu0 %v54
    %166 = vmatprep.subr.mxu0 0.0
    %167 = vmatpush1.msra.mxu0 %v55
    %168 = vmatprep.subr.mxu0 0.0
    %169 = vmatpush1.msra.mxu0 0.0
    %170 = vmatprep.subr.mxu0 0.0
    %171 = vmatpush1.msra.mxu0 0.0
    %172 = vmatprep.subr.mxu0 0.0
    %173 = vmatpush1.msra.mxu0 0.0
    %174 = vmatprep.subr.mxu0 0.0
    %175 = vmatpush1.msra.mxu0 0.0
    %176 = vmatprep.subr.mxu0 0.0
    %177 = vmatpush1.msra.mxu0 0.0
    %178 = vmatprep.subr.mxu0 0.0
    %179 = vmatpush1.msra.mxu0 0.0
    %180 = vmatprep.subr.mxu0 0.0
    %181 = vmatpush1.msra.mxu0 0.0
    %182 = vmatprep.subr.mxu0 0.0
    %183 = vmatpush1.msra.mxu0 0.0
    %184 = vmatprep.subr.mxu0 0.0
    %185 = vmatpush1.msra.mxu0 0.0
    %186 = vmatprep.subr.mxu0 0.0
    %187 = vmatpush1.msra.mxu0 0.0
    %188 = vmatprep.subr.mxu0 0.0
    %189 = vmatpush1.msra.mxu0 0.0
    %190 = vmatprep.subr.mxu0 0.0
    %191 = vmatpush1.msra.mxu0 0.0
    %192 = vmatprep.subr.mxu0 0.0
    %193 = vmatpush1.msra.mxu0 0.0
    %194 = vmatprep.subr.mxu0 0.0
    %195 = vmatpush1.msra.mxu0 0.0
    %196 = vmatprep.subr.mxu0 0.0
    %197 = vmatpush1.msra.mxu0 0.0
    %198 = vmatprep.subr.mxu0 0.0
    %199 = vmatpush1.msra.mxu0 0.0
    %200 = vmatprep.mubr.f32.mxu0 0.0
    %201 = vmatmul.mubr.f32.gmra.mrb[0].mxu0 %v38
    %v202 = vpop.f32.mrb[0].mxu0
    %v203 = vadd.f32 %v133, %v202
    %v204 = vpop.f32.mrb[0].mxu0
    %205 = vdwg.mxu0
    %v206 = vstv %s36
    %v207 = vadd.f32 %v203, %v206
    %v208 = vmax.f32 %v207, 0.0
    %v209 = vld [vmem:[%s4] sm:$0xff]
    %v210 = vld [vmem:[%s4 + $0x8] sm:$0xff]
    %v211 = vld [vmem:[%s4 + $0x10] sm:$0xff]
    %v212 = vld [vmem:[%s4 + $0x18] sm:$0xff]
    %v213 = vstv %s37
    %vm214 = vcmask 261120
    %v216 = vsel %vm214, %v208, 0
    %218 = vmatprep.subr.mxu0 0.0
    %219 = vmatpush1.msra.mxu0 %v209
    %220 = vmatprep.subr.mxu0 0.0
    %221 = vmatpush1.msra.mxu0 %v210
    %222 = vmatprep.subr.mxu0 0.0
    %223 = vmatpush1.msra.mxu0 %v211
    %224 = vmatprep.subr.mxu0 0.0
    %225 = vmatpush1.msra.mxu0 %v212
    %226 = vmatprep.subr.mxu0 0.0
    %227 = vmatpush1.msra.mxu0 0.0
    %228 = vmatprep.subr.mxu0 0.0
    %229 = vmatpush1.msra.mxu0 0.0
    %230 = vmatprep.subr.mxu0 0.0
    %231 = vmatpush1.msra.mxu0 0.0
    %232 = vmatprep.subr.mxu0 0.0
    %233 = vmatpush1.msra.mxu0 0.0
    %234 = vmatprep.subr.mxu0 0.0
    %235 = vmatpush1.msra.mxu0 0.0
    %236 = vmatprep.subr.mxu0 0.0
    %237 = vmatpush1.msra.mxu0 0.0
    %238 = vmatprep.subr.mxu0 0.0
    %239 = vmatpush1.msra.mxu0 0.0
    %240 = vmatprep.subr.mxu0 0.0
    %241 = vmatpush1.msra.mxu0 0.0
    %242 = vmatprep.subr.mxu0 0.0
    %243 = vmatpush1.msra.mxu0 0.0
    %244 = vmatprep.subr.mxu0 0.0
    %245 = vmatpush1.msra.mxu0 0.0
    %246 = vmatprep.subr.mxu0 0.0
    %247 = vmatpush1.msra.mxu0 0.0
    %248 = vmatprep.subr.mxu0 0.0
    %249 = vmatpush1.msra.mxu0 0.0
    %250 = vmatprep.subr.mxu0 0.0
    %251 = vmatpush1.msra.mxu0 0.0
    %252 = vmatprep.subr.mxu0 0.0
    %253 = vmatpush1.msra.mxu0 0.0
    %254 = vmatprep.subr.mxu0 0.0
    %255 = vmatpush1.msra.mxu0 0.0
    %256 = vmatprep.subr.mxu0 0.0
    %257 = vmatpush1.msra.mxu0 0.0
    %258 = vmatprep.subr.mxu0 0.0
    %259 = vmatpush1.msra.mxu0 0.0
    %260 = vmatprep.subr.mxu0 0.0
    %261 = vmatpush1.msra.mxu0 0.0
    %262 = vmatprep.subr.mxu0 0.0
    %263 = vmatpush1.msra.mxu0 0.0
    %264 = vmatprep.subr.mxu0 0.0
    %265 = vmatpush1.msra.mxu0 0.0
    %266 = vmatprep.subr.mxu0 0.0
    %267 = vmatpush1.msra.mxu0 0.0
    %268 = vmatprep.subr.mxu0 0.0
    %269 = vmatpush1.msra.mxu0 0.0
    %270 = vmatprep.subr.mxu0 0.0
    %271 = vmatpush1.msra.mxu0 0.0
    %272 = vmatprep.subr.mxu0 0.0
    %273 = vmatpush1.msra.mxu0 0.0
    %274 = vmatprep.subr.mxu0 0.0
    %275 = vmatpush1.msra.mxu0 0.0
    %276 = vmatprep.subr.mxu0 0.0
    %277 = vmatpush1.msra.mxu0 0.0
    %278 = vmatprep.subr.mxu0 0.0
    %279 = vmatpush1.msra.mxu0 0.0
    %280 = vmatprep.subr.mxu0 0.0
    %281 = vmatpush1.msra.mxu0 0.0
    %282 = vmatprep.mubr.f32.mxu0 0.0
    %283 = vmatmul.mubr.f32.gmra.mrb[0].mxu0 %v216
    %v284 = vpop.f32.mrb[0].mxu0
    %v285 = vadd.f32 %v213, %v284
    %v286 = vpop.f32.mrb[0].mxu0
    %287 = vdwg.mxu0
    %v288 = vmax.f32 %v285, 0.0
    %v289 = vxor.u32 %v288, 2147483648
    %v290 = vmul.f32 %v289, 1.442695
    %v291 = vpow.pop %v290
    %v292 = vadd.f32 %v291, 1.0
    %v293 = vrcp.pop %v292
    %v294 = vmul.f32 1.0, %v293
    %vm295 = vcmask 27648
    %296 = vst.msk [vmem:[%s6] sm:$0xf] %vm295, %v294
    // Predicated region
    $region30: #{va_layer.1} parent=1 // pred_check
      _
    $region31: #{va_layer.1} parent=1 // pred_check_branch
      %298 = sbr.rel (0) target = $region33
    $region32: #{va_layer.1} parent=1 // pred_region
      _
    $region33: #{va_layer.1} parent=1 // pred_fallthru
      _
    // Predicated region
    $region34: #{va_layer.1} parent=1 // pred_check
      _
    $region35: #{va_layer.1} parent=1 // pred_check_branch
      %300 = sbr.rel (0) target = $region37
    $region36: #{va_layer.1} parent=1 // pred_region
      _
    $region37: #{va_layer.1} parent=1 // pred_fallthru
      _
    %301 = vsyncpa [#allocation3], 1

</llo_original>
